<compile_context>
chip_gen: v7x
topology: tpu7x:2x2x1
jax: 0.10.0
libtpu: 0.0.40
codegen_flags: <defaults>
</compile_context>

<pallas_src>
import jax
import jax.numpy as jnp
from jax.experimental import pallas as pl
from jax.experimental.pallas import tpu as pltpu

LANE = 128  # TPU lane width: pad all feature/hidden/output dims to a multiple.


def mlp_kernel(x_ref, w1_ref, w2_ref, w3_ref, o_ref):
    # Weights arrive pre-transposed ([in, out]) and zero-padded, so every
    # matmul contracts on the last dim of the activation with no XLU
    # transpose/relayout; results feed the MXU directly.
    x = x_ref[...]
    h1 = jnp.maximum(
        jnp.dot(x, w1_ref[...], preferred_element_type=jnp.float32), 0.0)
    h2 = jnp.maximum(
        jnp.dot(h1, w2_ref[...], preferred_element_type=jnp.float32), 0.0)
    # Output dtype is already f32 and the last dim is padded to 128, so the
    # store is a lane-dense unmasked vst (no astype, no masked partial store).
    o_ref[...] = jnp.dot(h2, w3_ref[...], preferred_element_type=jnp.float32)


def _round_up(n, m):
    return pl.cdiv(n, m) * m


def _pad2d(a, rows, cols):
    return jnp.pad(a, ((0, rows - a.shape[0]), (0, cols - a.shape[1])))


def network_forward(x, w1, w2, w3, *, block_b=256):
    """Linear(in,4,no bias) -> ReLU -> Linear(4,4) -> ReLU -> Linear(4,3)."""
    batch, in_dim = x.shape
    h1_dim, _ = w1.shape
    h2_dim, _ = w2.shape
    out_dim, _ = w3.shape

    # Pad feature dims to lane multiples and batch to a multiple of the batch
    # block. Zero padding is exact: padded weight rows/cols are zero, so
    # padded activation columns stay zero through the ReLUs and contribute 0.
    k_pad = _round_up(in_dim, LANE)
    h1_pad = _round_up(h1_dim, LANE)
    h2_pad = _round_up(h2_dim, LANE)
    o_pad = _round_up(out_dim, LANE)
    b_pad = _round_up(batch, block_b)

    x_p = _pad2d(x, b_pad, k_pad)
    # Pre-transpose once in the wrapper -> no `.T` (XLU transpose) per matmul.
    w1_p = _pad2d(w1.T, k_pad, h1_pad)
    w2_p = _pad2d(w2.T, h1_pad, h2_pad)
    w3_p = _pad2d(w3.T, h2_pad, o_pad)

    grid = (b_pad // block_b,)

    out_padded = pl.pallas_call(
        mlp_kernel,
        out_shape=jax.ShapeDtypeStruct((b_pad, o_pad), jnp.float32),
        grid=grid,
        in_specs=[
            # Activations: one batch block per grid step (auto-pipelined).
            pl.BlockSpec((block_b, k_pad), lambda i: (i, 0)),
            # Weights: same block every step -> stay VMEM-resident across grid.
            pl.BlockSpec((k_pad, h1_pad), lambda i: (0, 0)),
            pl.BlockSpec((h1_pad, h2_pad), lambda i: (0, 0)),
            pl.BlockSpec((h2_pad, o_pad), lambda i: (0, 0)),
        ],
        out_specs=pl.BlockSpec((block_b, o_pad), lambda i: (i, 0)),
        compiler_params=pltpu.CompilerParams(
            # Batch blocks are independent: lets v7x's two TensorCores split
            # the grid; harmless (no-op) on single-TC v5e/v6e.
            dimension_semantics=("parallel",),
        ),
    )(x_p, w1_p, w2_p, w3_p)

    # Strip batch/lane padding back to the logical output shape.
    return out_padded[:batch, :out_dim]


def reference_forward(x, w1, w2, w3):
    h1 = jnp.maximum(x @ w1.T, 0.0)
    h2 = jnp.maximum(h1 @ w2.T, 0.0)
    return h2 @ w3.T


if __name__ == "__main__":
    input_dim = 16
    batch = 512  # exercises the batch grid: 2 blocks of 256 rows

    key = jax.random.PRNGKey(0)
    kx, k1, k2, k3 = jax.random.split(key, 4)

    # Deterministic synthetic parameters (nn.Linear shapes: [out, in], no bias).
    x = jax.random.normal(kx, (batch, input_dim), dtype=jnp.float32)
    w1 = jax.random.normal(k1, (4, input_dim), dtype=jnp.float32) * 0.1
    w2 = jax.random.normal(k2, (4, 4), dtype=jnp.float32) * 0.1
    w3 = jax.random.normal(k3, (3, 4), dtype=jnp.float32) * 0.1

    out = network_forward(x, w1, w2, w3)
    jax.block_until_ready(out)

    ref = reference_forward(x, w1, w2, w3)
    assert out.shape == (batch, 3)
    assert jnp.allclose(out, ref, atol=1e-5, rtol=1e-5)

    print("KERNEL_OK")
</pallas_src>

<mosaic_0001>
module attributes {stable_mosaic.version = 11 : i64} {
  func.func @mlp_kernel(%arg0: i32, %arg1: memref<256x128xf32, #tpu.memory_space<vmem>>, %arg2: memref<128x128xf32, #tpu.memory_space<vmem>>, %arg3: memref<128x128xf32, #tpu.memory_space<vmem>>, %arg4: memref<128x128xf32, #tpu.memory_space<vmem>>, %arg5: memref<256x128xf32, #tpu.memory_space<vmem>>) attributes {dimension_semantics = [#tpu.dimension_semantics<parallel>], iteration_bounds = array<i64: 2>, scalar_prefetch = 0 : i64, scratch_operands = 0 : i64, tpu.core_type = #tpu.core_type<tc>, window_params = [{transform_indices = @transform_0, window_bounds = array<i64: 256, 128>}, {pipeline_mode = #tpu.pipeline_mode<synchronous>, transform_indices = @transform_1, window_bounds = array<i64: 128, 128>}, {pipeline_mode = #tpu.pipeline_mode<synchronous>, transform_indices = @transform_2, window_bounds = array<i64: 128, 128>}, {pipeline_mode = #tpu.pipeline_mode<synchronous>, transform_indices = @transform_3, window_bounds = array<i64: 128, 128>}, {transform_indices = @transform_4, window_bounds = array<i64: 256, 128>}]} {
    %c0 = arith.constant 0 : index
    %c0_0 = arith.constant 0 : index
    %0 = vector.load %arg1[%c0, %c0_0] : memref<256x128xf32, #tpu.memory_space<vmem>>, vector<256x128xf32>
    %c0_1 = arith.constant 0 : index
    %c0_2 = arith.constant 0 : index
    %1 = vector.load %arg2[%c0_1, %c0_2] : memref<128x128xf32, #tpu.memory_space<vmem>>, vector<128x128xf32>
    %cst = arith.constant dense<0.000000e+00> : vector<256x128xf32>
    %2 = tpu.matmul %0, %1, %cst {dimension_numbers = #tpu.dot_dimension_numbers<[1], [0], [0], [1], [0, 0, 1, 1], [], []>} : vector<256x128xf32>, vector<128x128xf32>, vector<256x128xf32> -> vector<256x128xf32>
    %cst_3 = arith.constant 0.000000e+00 : f32
    %3 = vector.broadcast %cst_3 : f32 to vector<256x128xf32>
    %4 = arith.maximumf %2, %3 : vector<256x128xf32>
    %c0_4 = arith.constant 0 : index
    %c0_5 = arith.constant 0 : index
    %5 = vector.load %arg3[%c0_4, %c0_5] : memref<128x128xf32, #tpu.memory_space<vmem>>, vector<128x128xf32>
    %cst_6 = arith.constant dense<0.000000e+00> : vector<256x128xf32>
    %6 = tpu.matmul %4, %5, %cst_6 {dimension_numbers = #tpu.dot_dimension_numbers<[1], [0], [0], [1], [0, 0, 1, 1], [], []>} : vector<256x128xf32>, vector<128x128xf32>, vector<256x128xf32> -> vector<256x128xf32>
    %cst_7 = arith.constant 0.000000e+00 : f32
    %7 = vector.broadcast %cst_7 : f32 to vector<256x128xf32>
    %8 = arith.maximumf %6, %7 : vector<256x128xf32>
    %c0_8 = arith.constant 0 : index
    %c0_9 = arith.constant 0 : index
    %9 = vector.load %arg4[%c0_8, %c0_9] : memref<128x128xf32, #tpu.memory_space<vmem>>, vector<128x128xf32>
    %cst_10 = arith.constant dense<0.000000e+00> : vector<256x128xf32>
    %10 = tpu.matmul %8, %9, %cst_10 {dimension_numbers = #tpu.dot_dimension_numbers<[1], [0], [0], [1], [0, 0, 1, 1], [], []>} : vector<256x128xf32>, vector<128x128xf32>, vector<256x128xf32> -> vector<256x128xf32>
    %c0_11 = arith.constant 0 : index
    %c0_12 = arith.constant 0 : index
    %11 = vector.load %arg5[%c0_11, %c0_12] : memref<256x128xf32, #tpu.memory_space<vmem>>, vector<256x128xf32>
    tpu.vector_store %arg5[%c0_11, %c0_12], %10 {strides = array<i32>} : memref<256x128xf32, #tpu.memory_space<vmem>>, vector<256x128xf32>,
    return
  }
  func.func @transform_0(%arg0: i32) -> (i32, i32) {
    %c0_i32 = arith.constant 0 : i32
    %c0_i32_0 = arith.constant 0 : i32
    return %arg0, %c0_i32 : i32, i32
  }
  func.func @transform_1(%arg0: i32) -> (i32, i32) {
    %c0_i32 = arith.constant 0 : i32
    %c0_i32_0 = arith.constant 0 : i32
    %c0_i32_1 = arith.constant 0 : i32
    return %c0_i32, %c0_i32_0 : i32, i32
  }
  func.func @transform_2(%arg0: i32) -> (i32, i32) {
    %c0_i32 = arith.constant 0 : i32
    %c0_i32_0 = arith.constant 0 : i32
    %c0_i32_1 = arith.constant 0 : i32
    return %c0_i32, %c0_i32_0 : i32, i32
  }
  func.func @transform_3(%arg0: i32) -> (i32, i32) {
    %c0_i32 = arith.constant 0 : i32
    %c0_i32_0 = arith.constant 0 : i32
    %c0_i32_1 = arith.constant 0 : i32
    return %c0_i32, %c0_i32_0 : i32, i32
  }
  func.func @transform_4(%arg0: i32) -> (i32, i32) {
    %c0_i32 = arith.constant 0 : i32
    %c0_i32_0 = arith.constant 0 : i32
    return %arg0, %c0_i32 : i32, i32
  }
}

</mosaic_0001>

<llo_original>
// kernel: tpu_custom_call.1
$region0: #{tpu_custom_call.1}
  #allocation0 [shape = 'u32[]', space=smem, size = 0x4, offset = 0x4, fixed_abs, tag = 'smem constant byte address 0x4 - core index']
  #allocation1 [shape = 'u32[144,128]{1,0:T(1,128)}', space=vmem, size = 0x12000, scoped, tag = 'internal scratch']
  %s0 = inlined_call_operand.hbm [shape: f32[512,128], index: 0, kind: input, shape index: {}]
  %s1 = inlined_call_operand.hbm [shape: f32[128,128], index: 1, kind: input, shape index: {}]
  %s2 = inlined_call_operand.hbm [shape: f32[128,128], index: 2, kind: input, shape index: {}]
  %s3 = inlined_call_operand.hbm [shape: f32[128,128], index: 3, kind: input, shape index: {}]
  %s4 = inlined_call_operand.hbm [shape: f32[512,128], index: 4, kind: output, shape index: {}]
  %s5 = sld [smem:[#allocation0]]
  $region65: #{tpu_custom_call.1} parent=0
    _
  %s7 = ssub.s32 1, %s5
  %s8 = scalar_select 0, %s7, %s5
  $region1: #{tpu_custom_call.1} parent=0
    #allocation2 [shape = 'u8[262144]{0}', space=vmem, size = 0x40000, scoped, tag = 'input window, operand 0']
    #allocation3 [shape = 's32[2]{0}', space=sflag, size = 0x8, scoped, tag = 'scoped memory for tpu_custom_call.1']
    #allocation4 [shape = 's32[2]{0}', space=sflag, size = 0x8, scoped, tag = 'scoped memory for tpu_custom_call.1']
    #allocation5 [shape = 'u8[65536]{0}', space=vmem, size = 0x10000, scoped, tag = 'input window, operand 1, single buffered']
    #allocation6 [shape = 's32[1]{0}', space=sflag, size = 0x4, scoped, tag = 'scoped memory for tpu_custom_call.1']
    #allocation7 [shape = 'u8[65536]{0}', space=vmem, size = 0x10000, scoped, tag = 'input window, operand 2, single buffered']
    #allocation8 [shape = 'u8[65536]{0}', space=vmem, size = 0x10000, scoped, tag = 'input window, operand 3, single buffered']
    #allocation9 [shape = 's32[1]{0}', space=sflag, size = 0x4, scoped, tag = 'scoped memory for tpu_custom_call.1']
    #allocation10 [shape = 'u8[262144]{0}', space=vmem, size = 0x40000, scoped, tag = 'output window, operand 0']
    %9 = vsyncpa [#allocation3], 0
    %s10 = scalar_lea.sflag [#allocation3], 1
    %11 = vsyncpa %s10, 0
    %12 = vsyncpa [#allocation6], 0
    %13 = vsyncpa [#allocation9], 0
    %14 = vsyncpa [#allocation4], 0
    %s15 = scalar_lea.sflag [#allocation4], 1
    %16 = vsyncpa %s15, 0
    loop: start=0, step=1, limit=4
    $region2: #{tpu_custom_call.1} parent=1 // loop_pre_header
      _
    $region3: #{tpu_custom_call.1} parent=1 // loop_header
      %s18 = sphi 0, %s22
      %p19 = scmp.ge.s32.totalorder %s18, 4
      %s28 = sphi 0, %s30
      %s31 = sphi 0, %s28
      %s32 = sphi 0, %s31
      %s48 = sphi 0, %s32
      %s52 = sphi 0, %s52
      %s54 = sphi 0, %s52
      %s55 = sphi 0, %s54
      %s69 = sphi 0, %s55
      %s73 = sphi 0, %s73
      %s75 = sphi 0, %s73
      %s76 = sphi 0, %s75
      %s90 = sphi 0, %s76
      %s94 = sphi 0, %s94
      %s96 = sphi 0, %s94
      %s97 = sphi 0, %s96
      %s111 = sphi 0, %s97
      %s117 = sphi 0, %s119
      %s120 = sphi 0, %s117
      %s121 = sphi 0, %s120
      %s137 = sphi 0, %s121
    $region4: #{tpu_custom_call.1} parent=1 // loop_header_branch
      %21 = sbr.rel (%p19) target = $region8
    $region5: #{tpu_custom_call.1} parent=1 // loop_body
      %s23 = ssub.s32 %s18, 1
      %s24 = ssub.s32 %s18, 2
      %s25 = sadd.s32 %s18, 1
      %s26 = ssub.s32 %s18, %s25
      %p27 = scmp.eq.s32.totalorder %s26, 0
      %s29 = sadd.s32 %s28, 1
      %s30 = scalar_select %p27, %s28, %s29
      %p33 = pneg %p27
      %p34 = scmp.eq.s32.totalorder %s18, 1
      %p35 = por %p33, %p34
      %p36 = scmp.ne.s32.totalorder %s28, %s31
      %p37 = scmp.eq.s32.totalorder %s18, 0
      %p38 = por %p36, %p37
      %p39 = scmp.ne.s32.totalorder %s28, %s31
      %p40 = scmp.eq.s32.totalorder %s23, 1
      %p41 = por %p39, %p40
      %p42 = scmp.ne.s32.totalorder %s31, %s32
      %p43 = scmp.eq.s32.totalorder %s23, 0
      %p44 = por %p42, %p43
      %p45 = scmp.ne.s32.totalorder %s31, %s32
      %p46 = scmp.eq.s32.totalorder %s24, 1
      %p47 = por %p45, %p46
      %p49 = scmp.ne.s32.totalorder %s32, %s48
      %p50 = scmp.eq.s32.totalorder %s24, 0
      %p51 = por %p49, %p50
      %s53 = sadd.s32 %s52, 1
      %p56 = scmp.eq.s32.totalorder %s18, 1
      %p57 = scmp.ne.s32.totalorder %s52, %s54
      %p58 = scmp.eq.s32.totalorder %s18, 0
      %p59 = por %p57, %p58
      %p60 = scmp.ne.s32.totalorder %s52, %s54
      %p61 = scmp.eq.s32.totalorder %s23, 1
      %p62 = por %p60, %p61
      %p63 = scmp.ne.s32.totalorder %s54, %s55
      %p64 = scmp.eq.s32.totalorder %s23, 0
      %p65 = por %p63, %p64
      %p66 = scmp.ne.s32.totalorder %s54, %s55
      %p67 = scmp.eq.s32.totalorder %s24, 1
      %p68 = por %p66, %p67
      %p70 = scmp.ne.s32.totalorder %s55, %s69
      %p71 = scmp.eq.s32.totalorder %s24, 0
      %p72 = por %p70, %p71
      %s74 = sadd.s32 %s73, 1
      %p77 = scmp.eq.s32.totalorder %s18, 1
      %p78 = scmp.ne.s32.totalorder %s73, %s75
      %p79 = scmp.eq.s32.totalorder %s18, 0
      %p80 = por %p78, %p79
      %p81 = scmp.ne.s32.totalorder %s73, %s75
      %p82 = scmp.eq.s32.totalorder %s23, 1
      %p83 = por %p81, %p82
      %p84 = scmp.ne.s32.totalorder %s75, %s76
      %p85 = scmp.eq.s32.totalorder %s23, 0
      %p86 = por %p84, %p85
      %p87 = scmp.ne.s32.totalorder %s75, %s76
      %p88 = scmp.eq.s32.totalorder %s24, 1
      %p89 = por %p87, %p88
      %p91 = scmp.ne.s32.totalorder %s76, %s90
      %p92 = scmp.eq.s32.totalorder %s24, 0
      %p93 = por %p91, %p92
      %s95 = sadd.s32 %s94, 1
      %p98 = scmp.eq.s32.totalorder %s18, 1
      %p99 = scmp.ne.s32.totalorder %s94, %s96
      %p100 = scmp.eq.s32.totalorder %s18, 0
      %p101 = por %p99, %p100
      %p102 = scmp.ne.s32.totalorder %s94, %s96
      %p103 = scmp.eq.s32.totalorder %s23, 1
      %p104 = por %p102, %p103
      %p105 = scmp.ne.s32.totalorder %s96, %s97
      %p106 = scmp.eq.s32.totalorder %s23, 0
      %p107 = por %p105, %p106
      %p108 = scmp.ne.s32.totalorder %s96, %s97
      %p109 = scmp.eq.s32.totalorder %s24, 1
      %p110 = por %p108, %p109
      %p112 = scmp.ne.s32.totalorder %s97, %s111
      %p113 = scmp.eq.s32.totalorder %s24, 0
      %p114 = por %p112, %p113
      %s115 = ssub.s32 %s18, %s25
      %p116 = scmp.eq.s32.totalorder %s115, 0
      %s118 = sadd.s32 %s117, 1
      %s119 = scalar_select %p116, %s117, %s118
      %p122 = pneg %p116
      %p123 = scmp.eq.s32.totalorder %s18, 1
      %p124 = por %p122, %p123
      %p125 = scmp.ne.s32.totalorder %s117, %s120
      %p126 = scmp.eq.s32.totalorder %s18, 0
      %p127 = por %p125, %p126
      %p128 = scmp.ne.s32.totalorder %s117, %s120
      %p129 = scmp.eq.s32.totalorder %s23, 1
      %p130 = por %p128, %p129
      %p131 = scmp.ne.s32.totalorder %s120, %s121
      %p132 = scmp.eq.s32.totalorder %s23, 0
      %p133 = por %p131, %p132
      %p134 = scmp.ne.s32.totalorder %s120, %s121
      %p135 = scmp.eq.s32.totalorder %s24, 1
      %p136 = por %p134, %p135
      %p138 = scmp.ne.s32.totalorder %s121, %s137
      %p139 = scmp.eq.s32.totalorder %s24, 0
      %p140 = por %p138, %p139
      %p141 = scmp.le.s32.totalorder 1, %s18
      %p142 = scmp.lt.s32.totalorder %s18, 3
      %p143 = pnand %p141, %p142
      %p144 = pneg %p143
      // Predicated region
      $region9: #{tpu_custom_call.1} parent=5 // pred_check
        _
      $region10: #{tpu_custom_call.1} parent=5 // pred_check_branch
        %146 = sbr.rel (%p143) target = $region12
      $region11: #{tpu_custom_call.1} parent=5 // pred_region
        %s147 = ssub.s32 %s18, 1
        // Predicated region
        $region13: #{tpu_custom_call.1} parent=11 // pred_check
          %p148 = pneg %p65
        $region14: #{tpu_custom_call.1} parent=11 // pred_check_branch
          %150 = sbr.rel (%p148) target = $region16
        $region15: #{tpu_custom_call.1} parent=11 // pred_region
          %s152 = ssub.s32 2048, 2048
          %153 = vsyncadd [#allocation6], %s152
          %s154 = sshll.u32 [#allocation5], 4
          %s155 = int_to_ptr.vmem [resolvable:$true] %s154
          %160 = dma.hbm_to_vmem [thread:$0]  %s1, 2048, %s155, [#allocation6], 128, 128, 8
        $region16: #{tpu_custom_call.1} parent=11 // pred_fallthru
          _
        // Predicated region
        $region17: #{tpu_custom_call.1} parent=11 // pred_check
          %p161 = pneg %p86
        $region18: #{tpu_custom_call.1} parent=11 // pred_check_branch
          %163 = sbr.rel (%p161) target = $region20
        $region19: #{tpu_custom_call.1} parent=11 // pred_region
          %s165 = ssub.s32 2048, 2048
          %166 = vsyncadd [#allocation6], %s165
          %s167 = sshll.u32 [#allocation7], 4
          %s168 = int_to_ptr.vmem [resolvable:$true] %s167
          %173 = dma.hbm_to_vmem [thread:$0]  %s2, 2048, %s168, [#allocation6], 128, 128, 8
        $region20: #{tpu_custom_call.1} parent=11 // pred_fallthru
          _
        // Predicated region
        $region21: #{tpu_custom_call.1} parent=11 // pred_check
          %p174 = pneg %p107
        $region22: #{tpu_custom_call.1} parent=11 // pred_check_branch
          %176 = sbr.rel (%p174) target = $region24
        $region23: #{tpu_custom_call.1} parent=11 // pred_region
          %s178 = ssub.s32 2048, 2048
          %179 = vsyncadd [#allocation9], %s178
          %s180 = sshll.u32 [#allocation8], 4
          %s181 = int_to_ptr.vmem [resolvable:$true] %s180
          %186 = dma.hbm_to_vmem [thread:$0]  %s3, 2048, %s181, [#allocation9], 128, 128, 8
        $region24: #{tpu_custom_call.1} parent=11 // pred_fallthru
          _
      $region12: #{tpu_custom_call.1} parent=5 // pred_fallthru
        _
      %p187 = scmp.lt.s32.totalorder %s18, 2
      // Predicated region
      $region25: #{tpu_custom_call.1} parent=5 // pred_check
        %p188 = pneg %p187
      $region26: #{tpu_custom_call.1} parent=5 // pred_check_branch
        %190 = sbr.rel (%p188) target = $region28
      $region27: #{tpu_custom_call.1} parent=5 // pred_region
        // Predicated region
        $region29: #{tpu_custom_call.1} parent=27 // pred_check
          %p191 = pneg %p38
        $region30: #{tpu_custom_call.1} parent=27 // pred_check_branch
          %193 = sbr.rel (%p191) target = $region32
        $region31: #{tpu_custom_call.1} parent=27 // pred_region
          %s194 = sand.u32 %s28, 1
          %s195 = scalar_lea.sflag [#allocation3], %s194
          %s196 = sand.u32 %s28, 1
          %s197 = smul.addr %s196, 256
          %s198 = scalar_lea.vmem [#allocation2], %s197
          %s199 = smul.u32 32, %s18
          %s201 = ssub.s32 4096, 4096
          %202 = vsyncadd %s195, %s201
          %s203 = smul.addr %s199, 128
          %s204 = scalar_lea.hbm %s0, %s203
          %s205 = sshll.u32 %s198, 4
          %s206 = int_to_ptr.vmem [resolvable:$true] %s205
          %211 = dma.hbm_to_vmem [thread:$0]  %s204, 4096, %s206, %s195, 128, 128, 8
        $region32: #{tpu_custom_call.1} parent=27 // pred_fallthru
          _
      $region28: #{tpu_custom_call.1} parent=5 // pred_fallthru
        _
      %p212 = scmp.le.s32.totalorder 1, %s18
      %p213 = scmp.lt.s32.totalorder %s18, 3
      %p214 = pnand %p212, %p213
      %p215 = pneg %p214
      // Predicated region
      $region33: #{tpu_custom_call.1} parent=5 // pred_check
        _
      $region34: #{tpu_custom_call.1} parent=5 // pred_check_branch
        %217 = sbr.rel (%p214) target = $region36
      $region35: #{tpu_custom_call.1} parent=5 // pred_region
        %s218 = ssub.s32 %s18, 1
        %s219 = sand.u32 %s31, 1
        %s220 = scalar_lea.sflag [#allocation3], %s219
        %s221 = sand.u32 %s31, 1
        %s222 = smul.addr %s221, 256
        %s223 = scalar_lea.vmem [#allocation2], %s222
        // Predicated region
        $region37: #{tpu_custom_call.1} parent=35 // pred_check
          %p224 = pneg %p44
        $region38: #{tpu_custom_call.1} parent=35 // pred_check_branch
          %226 = sbr.rel (%p224) target = $region40
        $region39: #{tpu_custom_call.1} parent=35 // pred_region
          %227 = dma.done %s220, 4096
        $region40: #{tpu_custom_call.1} parent=35 // pred_fallthru
          _
        // Predicated region
        $region41: #{tpu_custom_call.1} parent=35 // pred_check
          %p228 = pneg %p65
        $region42: #{tpu_custom_call.1} parent=35 // pred_check_branch
          %230 = sbr.rel (%p228) target = $region44
        $region43: #{tpu_custom_call.1} parent=35 // pred_region
          %231 = dma.done [#allocation6], 2048
        $region44: #{tpu_custom_call.1} parent=35 // pred_fallthru
          _
        // Predicated region
        $region45: #{tpu_custom_call.1} parent=35 // pred_check
          %p232 = pneg %p86
        $region46: #{tpu_custom_call.1} parent=35 // pred_check_branch
          %234 = sbr.rel (%p232) target = $region48
        $region47: #{tpu_custom_call.1} parent=35 // pred_region
          %235 = dma.done [#allocation6], 2048
        $region48: #{tpu_custom_call.1} parent=35 // pred_fallthru
          _
        // Predicated region
        $region49: #{tpu_custom_call.1} parent=35 // pred_check
          %p236 = pneg %p107
        $region50: #{tpu_custom_call.1} parent=35 // pred_check_branch
          %238 = sbr.rel (%p236) target = $region52
        $region51: #{tpu_custom_call.1} parent=35 // pred_region
          %239 = dma.done [#allocation9], 2048
        $region52: #{tpu_custom_call.1} parent=35 // pred_fallthru
          _
        %s240 = sand.u32 %s31, 1
        %s241 = scalar_lea.sflag [#allocation3], %s240
        %s242 = sand.u32 %s31, 1
        %s243 = smul.addr %s242, 256
        %s244 = scalar_lea.vmem [#allocation2], %s243
        %p245 = pneg %p44
        %p246 = pneg %p41
        %p247 = pneg %p65
        %p248 = pneg %p62
        %p249 = pneg %p86
        %p250 = pneg %p83
        %p251 = pneg %p107
        %p252 = pneg %p104
        %p253 = pneg %p133
        %p254 = pneg %p130
        %s255 = sand.u32 %s120, 1
        %s256 = scalar_lea.sflag [#allocation4], %s255
        %s257 = sand.u32 %s120, 1
        %s258 = smul.addr %s257, 256
        %s259 = scalar_lea.vmem [#allocation10], %s258
        %s260 = smul.u32 32, %s23
        %s261 = smul.u32 32, %s23
        %v262 = vld [vmem:[%s223] sm:$0xff]
        %v263 = vld [vmem:[%s223 + $0x8] sm:$0xff]
        %v264 = vld [vmem:[%s223 + $0x10] sm:$0xff]
        %v265 = vld [vmem:[%s223 + $0x18] sm:$0xff]
        %v266 = vld [vmem:[%s223 + $0x20] sm:$0xff]
        %v267 = vld [vmem:[%s223 + $0x28] sm:$0xff]
        %v268 = vld [vmem:[%s223 + $0x30] sm:$0xff]
        %v269 = vld [vmem:[%s223 + $0x38] sm:$0xff]
        %v270 = vld [vmem:[%s223 + $0x40] sm:$0xff]
        %v271 = vld [vmem:[%s223 + $0x48] sm:$0xff]
        %v272 = vld [vmem:[%s223 + $0x50] sm:$0xff]
        %v273 = vld [vmem:[%s223 + $0x58] sm:$0xff]
        %v274 = vld [vmem:[%s223 + $0x60] sm:$0xff]
        %v275 = vld [vmem:[%s223 + $0x68] sm:$0xff]
        %v276 = vld [vmem:[%s223 + $0x70] sm:$0xff]
        %v277 = vld [vmem:[%s223 + $0x78] sm:$0xff]
        %v278 = vld [vmem:[%s223 + $0x80] sm:$0xff]
        %v279 = vld [vmem:[%s223 + $0x88] sm:$0xff]
        %v280 = vld [vmem:[%s223 + $0x90] sm:$0xff]
        %v281 = vld [vmem:[%s223 + $0x98] sm:$0xff]
        %v282 = vld [vmem:[%s223 + $0xa0] sm:$0xff]
        %v283 = vld [vmem:[%s223 + $0xa8] sm:$0xff]
        %v284 = vld [vmem:[%s223 + $0xb0] sm:$0xff]
        %v285 = vld [vmem:[%s223 + $0xb8] sm:$0xff]
        %v286 = vld [vmem:[%s223 + $0xc0] sm:$0xff]
        %v287 = vld [vmem:[%s223 + $0xc8] sm:$0xff]
        %v288 = vld [vmem:[%s223 + $0xd0] sm:$0xff]
        %v289 = vld [vmem:[%s223 + $0xd8] sm:$0xff]
        %v290 = vld [vmem:[%s223 + $0xe0] sm:$0xff]
        %v291 = vld [vmem:[%s223 + $0xe8] sm:$0xff]
        %v292 = vld [vmem:[%s223 + $0xf0] sm:$0xff]
        %v293 = vld [vmem:[%s223 + $0xf8] sm:$0xff]
        %v294 = vld [vmem:[#allocation5] sm:$0xff]
        %v295 = vld [vmem:[#allocation5 + $0x8] sm:$0xff]
        %v296 = vld [vmem:[#allocation5 + $0x10] sm:$0xff]
        %v297 = vld [vmem:[#allocation5 + $0x18] sm:$0xff]
        %v298 = vld [vmem:[#allocation5 + $0x20] sm:$0xff]
        %v299 = vld [vmem:[#allocation5 + $0x28] sm:$0xff]
        %v300 = vld [vmem:[#allocation5 + $0x30] sm:$0xff]
        %v301 = vld [vmem:[#allocation5 + $0x38] sm:$0xff]
        %v302 = vld [vmem:[#allocation5 + $0x40] sm:$0xff]
        %v303 = vld [vmem:[#allocation5 + $0x48] sm:$0xff]
        %v304 = vld [vmem:[#allocation5 + $0x50] sm:$0xff]
        %v305 = vld [vmem:[#allocation5 + $0x58] sm:$0xff]
        %v306 = vld [vmem:[#allocation5 + $0x60] sm:$0xff]
        %v307 = vld [vmem:[#allocation5 + $0x68] sm:$0xff]
        %v308 = vld [vmem:[#allocation5 + $0x70] sm:$0xff]
        %v309 = vld [vmem:[#allocation5 + $0x78] sm:$0xff]
        %310 = vmatprep.subr.mxu0 0.0
        %311 = vmatpush1.msra.mxu0 %v294
        %312 = vmatprep.subr.mxu0 0.0
        %313 = vmatpush1.msra.mxu0 %v295
        %314 = vmatprep.subr.mxu0 0.0
        %315 = vmatpush1.msra.mxu0 %v296
        %316 = vmatprep.subr.mxu0 0.0
        %317 = vmatpush1.msra.mxu0 %v297
        %318 = vmatprep.subr.mxu0 0.0
        %319 = vmatpush1.msra.mxu0 %v298
        %320 = vmatprep.subr.mxu0 0.0
        %321 = vmatpush1.msra.mxu0 %v299
        %322 = vmatprep.subr.mxu0 0.0
        %323 = vmatpush1.msra.mxu0 %v300
        %324 = vmatprep.subr.mxu0 0.0
        %325 = vmatpush1.msra.mxu0 %v301
        %326 = vmatprep.subr.mxu0 0.0
        %327 = vmatpush1.msra.mxu0 %v302
        %328 = vmatprep.subr.mxu0 0.0
        %329 = vmatpush1.msra.mxu0 %v303
        %330 = vmatprep.subr.mxu0 0.0
        %331 = vmatpush1.msra.mxu0 %v304
        %332 = vmatprep.subr.mxu0 0.0
        %333 = vmatpush1.msra.mxu0 %v305
        %334 = vmatprep.subr.mxu0 0.0
        %335 = vmatpush1.msra.mxu0 %v306
        %336 = vmatprep.subr.mxu0 0.0
        %337 = vmatpush1.msra.mxu0 %v307
        %338 = vmatprep.subr.mxu0 0.0
        %339 = vmatpush1.msra.mxu0 %v308
        %340 = vmatprep.subr.mxu0 0.0
        %341 = vmatpush1.msra.mxu0 %v309
        %342 = vmatprep.subr.mxu0 0.0
        %343 = vmatpush1.msra.mxu0 0.0
        %344 = vmatprep.subr.mxu0 0.0
        %345 = vmatpush1.msra.mxu0 0.0
        %346 = vmatprep.subr.mxu0 0.0
        %347 = vmatpush1.msra.mxu0 0.0
        %348 = vmatprep.subr.mxu0 0.0
        %349 = vmatpush1.msra.mxu0 0.0
        %350 = vmatprep.subr.mxu0 0.0
        %351 = vmatpush1.msra.mxu0 0.0
        %352 = vmatprep.subr.mxu0 0.0
        %353 = vmatpush1.msra.mxu0 0.0
        %354 = vmatprep.subr.mxu0 0.0
        %355 = vmatpush1.msra.mxu0 0.0
        %356 = vmatprep.subr.mxu0 0.0
        %357 = vmatpush1.msra.mxu0 0.0
        %358 = vmatprep.subr.mxu0 0.0
        %359 = vmatpush1.msra.mxu0 0.0
        %360 = vmatprep.subr.mxu0 0.0
        %361 = vmatpush1.msra.mxu0 0.0
        %362 = vmatprep.subr.mxu0 0.0
        %363 = vmatpush1.msra.mxu0 0.0
        %364 = vmatprep.subr.mxu0 0.0
        %365 = vmatpush1.msra.mxu0 0.0
        %366 = vmatprep.subr.mxu0 0.0
        %367 = vmatpush1.msra.mxu0 0.0
        %368 = vmatprep.subr.mxu0 0.0
        %369 = vmatpush1.msra.mxu0 0.0
        %370 = vmatprep.subr.mxu0 0.0
        %371 = vmatpush1.msra.mxu0 0.0
        %372 = vmatprep.subr.mxu0 0.0
        %373 = vmatpush1.msra.mxu0 0.0
        %374 = vmatprep.mubr.f32.mxu0 0.0
        %375 = vmatmul.mubr.f32.gmra.mrb[0].mxu0 %v262
        %v376 = vpop.f32.mrb[0].mxu0
        %v377 = vadd.f32 0.0, %v376
        %v378 = vpop.f32.mrb[0].mxu0
        %379 = vmatprep.mubr.f32.mxu0 0.0
        %380 = vmatmul.mubr.f32.gmra.mrb[0].mxu0 %v263
        %v381 = vpop.f32.mrb[0].mxu0
        %v382 = vadd.f32 0.0, %v381
        %v383 = vpop.f32.mrb[0].mxu0
        %384 = vmatprep.mubr.f32.mxu0 0.0
        %385 = vmatmul.mubr.f32.gmra.mrb[0].mxu0 %v264
        %v386 = vpop.f32.mrb[0].mxu0
        %v387 = vadd.f32 0.0, %v386
        %v388 = vpop.f32.mrb[0].mxu0
        %389 = vmatprep.mubr.f32.mxu0 0.0
        %390 = vmatmul.mubr.f32.gmra.mrb[0].mxu0 %v265
        %v391 = vpop.f32.mrb[0].mxu0
        %v392 = vadd.f32 0.0, %v391
        %v393 = vpop.f32.mrb[0].mxu0
        %394 = vmatprep.mubr.f32.mxu0 0.0
        %395 = vmatmul.mubr.f32.gmra.mrb[0].mxu0 %v266
        %v396 = vpop.f32.mrb[0].mxu0
        %v397 = vadd.f32 0.0, %v396
        %v398 = vpop.f32.mrb[0].mxu0
        %399 = vmatprep.mubr.f32.mxu0 0.0
        %400 = vmatmul.mubr.f32.gmra.mrb[0].mxu0 %v267
        %v401 = vpop.f32.mrb[0].mxu0
        %v402 = vadd.f32 0.0, %v401
        %v403 = vpop.f32.mrb[0].mxu0
        %404 = vmatprep.mubr.f32.mxu0 0.0
        %405 = vmatmul.mubr.f32.gmra.mrb[0].mxu0 %v268
        %v406 = vpop.f32.mrb[0].mxu0
        %v407 = vadd.f32 0.0, %v406
        %v408 = vpop.f32.mrb[0].mxu0
        %409 = vmatprep.mubr.f32.mxu0 0.0
        %410 = vmatmul.mubr.f32.gmra.mrb[0].mxu0 %v269
        %v411 = vpop.f32.mrb[0].mxu0
        %v412 = vadd.f32 0.0, %v411
        %v413 = vpop.f32.mrb[0].mxu0
        %414 = vmatprep.mubr.f32.mxu0 0.0
        %415 = vmatmul.mubr.f32.gmra.mrb[0].mxu0 %v270
        %v416 = vpop.f32.mrb[0].mxu0
        %v417 = vadd.f32 0.0, %v416
        %v418 = vpop.f32.mrb[0].mxu0
        %419 = vmatprep.mubr.f32.mxu0 0.0
        %420 = vmatmul.mubr.f32.gmra.mrb[0].mxu0 %v271
        %v421 = vpop.f32.mrb[0].mxu0
        %v422 = vadd.f32 0.0, %v421
        %v423 = vpop.f32.mrb[0].mxu0
        %424 = vmatprep.mubr.f32.mxu0 0.0
        %425 = vmatmul.mubr.f32.gmra.mrb[0].mxu0 %v272
        %v426 = vpop.f32.mrb[0].mxu0
        %v427 = vadd.f32 0.0, %v426
        %v428 = vpop.f32.mrb[0].mxu0
        %429 = vmatprep.mubr.f32.mxu0 0.0
        %430 = vmatmul.mubr.f32.gmra.mrb[0].mxu0 %v273
        %v431 = vpop.f32.mrb[0].mxu0
        %v432 = vadd.f32 0.0, %v431
        %v433 = vpop.f32.mrb[0].mxu0
        %434 = vmatprep.mubr.f32.mxu0 0.0
        %435 = vmatmul.mubr.f32.gmra.mrb[0].mxu0 %v274
        %v436 = vpop.f32.mrb[0].mxu0
        %v437 = vadd.f32 0.0, %v436
        %v438 = vpop.f32.mrb[0].mxu0
        %439 = vmatprep.mubr.f32.mxu0 0.0
        %440 = vmatmul.mubr.f32.gmra.mrb[0].mxu0 %v275
        %v441 = vpop.f32.mrb[0].mxu0
        %v442 = vadd.f32 0.0, %v441
        %v443 = vpop.f32.mrb[0].mxu0
        %444 = vmatprep.mubr.f32.mxu0 0.0
        %445 = vmatmul.mubr.f32.gmra.mrb[0].mxu0 %v276
        %v446 = vpop.f32.mrb[0].mxu0
        %v447 = vadd.f32 0.0, %v446
        %v448 = vpop.f32.mrb[0].mxu0
        %449 = vmatprep.mubr.f32.mxu0 0.0
        %450 = vmatmul.mubr.f32.gmra.mrb[0].mxu0 %v277
        %v451 = vpop.f32.mrb[0].mxu0
        %v452 = vadd.f32 0.0, %v451
        %v453 = vpop.f32.mrb[0].mxu0
        %454 = vmatprep.mubr.f32.mxu0 0.0
        %455 = vmatmul.mubr.f32.gmra.mrb[0].mxu0 %v278
        %v456 = vpop.f32.mrb[0].mxu0
        %v457 = vadd.f32 0.0, %v456
        %v458 = vpop.f32.mrb[0].mxu0
        %459 = vmatprep.mubr.f32.mxu0 0.0
        %460 = vmatmul.mubr.f32.gmra.mrb[0].mxu0 %v279
        %v461 = vpop.f32.mrb[0].mxu0
        %v462 = vadd.f32 0.0, %v461
        %v463 = vpop.f32.mrb[0].mxu0
        %464 = vmatprep.mubr.f32.mxu0 0.0
        %465 = vmatmul.mubr.f32.gmra.mrb[0].mxu0 %v280
        %v466 = vpop.f32.mrb[0].mxu0
        %v467 = vadd.f32 0.0, %v466
        %v468 = vpop.f32.mrb[0].mxu0
        %469 = vmatprep.mubr.f32.mxu0 0.0
        %470 = vmatmul.mubr.f32.gmra.mrb[0].mxu0 %v281
        %v471 = vpop.f32.mrb[0].mxu0
        %v472 = vadd.f32 0.0, %v471
        %v473 = vpop.f32.mrb[0].mxu0
        %474 = vmatprep.mubr.f32.mxu0 0.0
        %475 = vmatmul.mubr.f32.gmra.mrb[0].mxu0 %v282
        %v476 = vpop.f32.mrb[0].mxu0
        %v477 = vadd.f32 0.0, %v476
        %v478 = vpop.f32.mrb[0].mxu0
        %479 = vmatprep.mubr.f32.mxu0 0.0
        %480 = vmatmul.mubr.f32.gmra.mrb[0].mxu0 %v283
        %v481 = vpop.f32.mrb[0].mxu0
        %v482 = vadd.f32 0.0, %v481
        %v483 = vpop.f32.mrb[0].mxu0
        %484 = vmatprep.mubr.f32.mxu0 0.0
        %485 = vmatmul.mubr.f32.gmra.mrb[0].mxu0 %v284
        %v486 = vpop.f32.mrb[0].mxu0
        %v487 = vadd.f32 0.0, %v486
        %v488 = vpop.f32.mrb[0].mxu0
        %489 = vmatprep.mubr.f32.mxu0 0.0
        %490 = vmatmul.mubr.f32.gmra.mrb[0].mxu0 %v285
        %v491 = vpop.f32.mrb[0].mxu0
        %v492 = vadd.f32 0.0, %v491
        %v493 = vpop.f32.mrb[0].mxu0
        %494 = vmatprep.mubr.f32.mxu0 0.0
        %495 = vmatmul.mubr.f32.gmra.mrb[0].mxu0 %v286
        %v496 = vpop.f32.mrb[0].mxu0
        %v497 = vadd.f32 0.0, %v496
        %v498 = vpop.f32.mrb[0].mxu0
        %499 = vmatprep.mubr.f32.mxu0 0.0
        %500 = vmatmul.mubr.f32.gmra.mrb[0].mxu0 %v287
        %v501 = vpop.f32.mrb[0].mxu0
        %v502 = vadd.f32 0.0, %v501
        %v503 = vpop.f32.mrb[0].mxu0
        %504 = vmatprep.mubr.f32.mxu0 0.0
        %505 = vmatmul.mubr.f32.gmra.mrb[0].mxu0 %v288
        %v506 = vpop.f32.mrb[0].mxu0
        %v507 = vadd.f32 0.0, %v506
        %v508 = vpop.f32.mrb[0].mxu0
        %509 = vmatprep.mubr.f32.mxu0 0.0
        %510 = vmatmul.mubr.f32.gmra.mrb[0].mxu0 %v289
        %v511 = vpop.f32.mrb[0].mxu0
        %v512 = vadd.f32 0.0, %v511
        %v513 = vpop.f32.mrb[0].mxu0
        %514 = vmatprep.mubr.f32.mxu0 0.0
        %515 = vmatmul.mubr.f32.gmra.mrb[0].mxu0 %v290
        %v516 = vpop.f32.mrb[0].mxu0
        %v517 = vadd.f32 0.0, %v516
        %v518 = vpop.f32.mrb[0].mxu0
        %519 = vmatprep.mubr.f32.mxu0 0.0
        %520 = vmatmul.mubr.f32.gmra.mrb[0].mxu0 %v291
        %v521 = vpop.f32.mrb[0].mxu0
        %v522 = vadd.f32 0.0, %v521
        %v523 = vpop.f32.mrb[0].mxu0
        %524 = vmatprep.mubr.f32.mxu0 0.0
        %525 = vmatmul.mubr.f32.gmra.mrb[0].mxu0 %v292
        %v526 = vpop.f32.mrb[0].mxu0
        %v527 = vadd.f32 0.0, %v526
        %v528 = vpop.f32.mrb[0].mxu0
        %529 = vmatprep.mubr.f32.mxu0 0.0
        %530 = vmatmul.mubr.f32.gmra.mrb[0].mxu0 %v293
        %v531 = vpop.f32.mrb[0].mxu0
        %v532 = vadd.f32 0.0, %v531
        %v533 = vpop.f32.mrb[0].mxu0
        %534 = vdwg.mxu0
        %v535 = vmax.f32 %v377, 0.0
        %v536 = vmax.f32 %v382, 0.0
        %v537 = vmax.f32 %v387, 0.0
        %v538 = vmax.f32 %v392, 0.0
        %v539 = vmax.f32 %v397, 0.0
        %v540 = vmax.f32 %v402, 0.0
        %v541 = vmax.f32 %v407, 0.0
        %v542 = vmax.f32 %v412, 0.0
        %v543 = vmax.f32 %v417, 0.0
        %v544 = vmax.f32 %v422, 0.0
        %v545 = vmax.f32 %v427, 0.0
        %v546 = vmax.f32 %v432, 0.0
        %v547 = vmax.f32 %v437, 0.0
        %v548 = vmax.f32 %v442, 0.0
        %v549 = vmax.f32 %v447, 0.0
        %v550 = vmax.f32 %v452, 0.0
        %v551 = vmax.f32 %v457, 0.0
        %v552 = vmax.f32 %v462, 0.0
        %v553 = vmax.f32 %v467, 0.0
        %v554 = vmax.f32 %v472, 0.0
        %v555 = vmax.f32 %v477, 0.0
        %v556 = vmax.f32 %v482, 0.0
        %v557 = vmax.f32 %v487, 0.0
        %v558 = vmax.f32 %v492, 0.0
        %v559 = vmax.f32 %v497, 0.0
        %v560 = vmax.f32 %v502, 0.0
        %v561 = vmax.f32 %v507, 0.0
        %v562 = vmax.f32 %v512, 0.0
        %v563 = vmax.f32 %v517, 0.0
        %v564 = vmax.f32 %v522, 0.0
        %v565 = vmax.f32 %v527, 0.0
        %v566 = vmax.f32 %v532, 0.0
        %v567 = vld [vmem:[#allocation7] sm:$0xff]
        %v568 = vld [vmem:[#allocation7 + $0x8] sm:$0xff]
        %v569 = vld [vmem:[#allocation7 + $0x10] sm:$0xff]
        %v570 = vld [vmem:[#allocation7 + $0x18] sm:$0xff]
        %v571 = vld [vmem:[#allocation7 + $0x20] sm:$0xff]
        %v572 = vld [vmem:[#allocation7 + $0x28] sm:$0xff]
        %v573 = vld [vmem:[#allocation7 + $0x30] sm:$0xff]
        %v574 = vld [vmem:[#allocation7 + $0x38] sm:$0xff]
        %v575 = vld [vmem:[#allocation7 + $0x40] sm:$0xff]
        %v576 = vld [vmem:[#allocation7 + $0x48] sm:$0xff]
        %v577 = vld [vmem:[#allocation7 + $0x50] sm:$0xff]
        %v578 = vld [vmem:[#allocation7 + $0x58] sm:$0xff]
        %v579 = vld [vmem:[#allocation7 + $0x60] sm:$0xff]
        %v580 = vld [vmem:[#allocation7 + $0x68] sm:$0xff]
        %v581 = vld [vmem:[#allocation7 + $0x70] sm:$0xff]
        %v582 = vld [vmem:[#allocation7 + $0x78] sm:$0xff]
        %583 = vmatprep.subr.mxu0 0.0
        %584 = vmatpush1.msra.mxu0 %v567
        %585 = vmatprep.subr.mxu0 0.0
        %586 = vmatpush1.msra.mxu0 %v568
        %587 = vmatprep.subr.mxu0 0.0
        %588 = vmatpush1.msra.mxu0 %v569
        %589 = vmatprep.subr.mxu0 0.0
        %590 = vmatpush1.msra.mxu0 %v570
        %591 = vmatprep.subr.mxu0 0.0
        %592 = vmatpush1.msra.mxu0 %v571
        %593 = vmatprep.subr.mxu0 0.0
        %594 = vmatpush1.msra.mxu0 %v572
        %595 = vmatprep.subr.mxu0 0.0
        %596 = vmatpush1.msra.mxu0 %v573
        %597 = vmatprep.subr.mxu0 0.0
        %598 = vmatpush1.msra.mxu0 %v574
        %599 = vmatprep.subr.mxu0 0.0
        %600 = vmatpush1.msra.mxu0 %v575
        %601 = vmatprep.subr.mxu0 0.0
        %602 = vmatpush1.msra.mxu0 %v576
        %603 = vmatprep.subr.mxu0 0.0
        %604 = vmatpush1.msra.mxu0 %v577
        %605 = vmatprep.subr.mxu0 0.0
        %606 = vmatpush1.msra.mxu0 %v578
        %607 = vmatprep.subr.mxu0 0.0
        %608 = vmatpush1.msra.mxu0 %v579
        %609 = vmatprep.subr.mxu0 0.0
        %610 = vmatpush1.msra.mxu0 %v580
        %611 = vmatprep.subr.mxu0 0.0
        %612 = vmatpush1.msra.mxu0 %v581
        %613 = vmatprep.subr.mxu0 0.0
        %614 = vmatpush1.msra.mxu0 %v582
        %615 = vmatprep.subr.mxu0 0.0
        %616 = vmatpush1.msra.mxu0 0.0
        %617 = vmatprep.subr.mxu0 0.0
        %618 = vmatpush1.msra.mxu0 0.0
        %619 = vmatprep.subr.mxu0 0.0
        %620 = vmatpush1.msra.mxu0 0.0
        %621 = vmatprep.subr.mxu0 0.0
        %622 = vmatpush1.msra.mxu0 0.0
        %623 = vmatprep.subr.mxu0 0.0
        %624 = vmatpush1.msra.mxu0 0.0
        %625 = vmatprep.subr.mxu0 0.0
        %626 = vmatpush1.msra.mxu0 0.0
        %627 = vmatprep.subr.mxu0 0.0
        %628 = vmatpush1.msra.mxu0 0.0
        %629 = vmatprep.subr.mxu0 0.0
        %630 = vmatpush1.msra.mxu0 0.0
        %631 = vmatprep.subr.mxu0 0.0
        %632 = vmatpush1.msra.mxu0 0.0
        %633 = vmatprep.subr.mxu0 0.0
        %634 = vmatpush1.msra.mxu0 0.0
        %635 = vmatprep.subr.mxu0 0.0
        %636 = vmatpush1.msra.mxu0 0.0
        %637 = vmatprep.subr.mxu0 0.0
        %638 = vmatpush1.msra.mxu0 0.0
        %639 = vmatprep.subr.mxu0 0.0
        %640 = vmatpush1.msra.mxu0 0.0
        %641 = vmatprep.subr.mxu0 0.0
        %642 = vmatpush1.msra.mxu0 0.0
        %643 = vmatprep.subr.mxu0 0.0
        %644 = vmatpush1.msra.mxu0 0.0
        %645 = vmatprep.subr.mxu0 0.0
        %646 = vmatpush1.msra.mxu0 0.0
        %647 = vmatprep.mubr.f32.mxu0 0.0
        %648 = vmatmul.mubr.f32.gmra.mrb[0].mxu0 %v535
        %v649 = vpop.f32.mrb[0].mxu0
        %v650 = vadd.f32 0.0, %v649
        %v651 = vpop.f32.mrb[0].mxu0
        %652 = vmatprep.mubr.f32.mxu0 0.0
        %653 = vmatmul.mubr.f32.gmra.mrb[0].mxu0 %v536
        %v654 = vpop.f32.mrb[0].mxu0
        %v655 = vadd.f32 0.0, %v654
        %v656 = vpop.f32.mrb[0].mxu0
        %657 = vmatprep.mubr.f32.mxu0 0.0
        %658 = vmatmul.mubr.f32.gmra.mrb[0].mxu0 %v537
        %v659 = vpop.f32.mrb[0].mxu0
        %v660 = vadd.f32 0.0, %v659
        %v661 = vpop.f32.mrb[0].mxu0
        %662 = vmatprep.mubr.f32.mxu0 0.0
        %663 = vmatmul.mubr.f32.gmra.mrb[0].mxu0 %v538
        %v664 = vpop.f32.mrb[0].mxu0
        %v665 = vadd.f32 0.0, %v664
        %v666 = vpop.f32.mrb[0].mxu0
        %667 = vmatprep.mubr.f32.mxu0 0.0
        %668 = vmatmul.mubr.f32.gmra.mrb[0].mxu0 %v539
        %v669 = vpop.f32.mrb[0].mxu0
        %v670 = vadd.f32 0.0, %v669
        %v671 = vpop.f32.mrb[0].mxu0
        %672 = vmatprep.mubr.f32.mxu0 0.0
        %673 = vmatmul.mubr.f32.gmra.mrb[0].mxu0 %v540
        %v674 = vpop.f32.mrb[0].mxu0
        %v675 = vadd.f32 0.0, %v674
        %v676 = vpop.f32.mrb[0].mxu0
        %677 = vmatprep.mubr.f32.mxu0 0.0
        %678 = vmatmul.mubr.f32.gmra.mrb[0].mxu0 %v541
        %v679 = vpop.f32.mrb[0].mxu0
        %v680 = vadd.f32 0.0, %v679
        %v681 = vpop.f32.mrb[0].mxu0
        %682 = vmatprep.mubr.f32.mxu0 0.0
        %683 = vmatmul.mubr.f32.gmra.mrb[0].mxu0 %v542
        %v684 = vpop.f32.mrb[0].mxu0
        %v685 = vadd.f32 0.0, %v684
        %v686 = vpop.f32.mrb[0].mxu0
        %687 = vmatprep.mubr.f32.mxu0 0.0
        %688 = vmatmul.mubr.f32.gmra.mrb[0].mxu0 %v543
        %v689 = vpop.f32.mrb[0].mxu0
        %v690 = vadd.f32 0.0, %v689
        %v691 = vpop.f32.mrb[0].mxu0
        %692 = vmatprep.mubr.f32.mxu0 0.0
        %693 = vmatmul.mubr.f32.gmra.mrb[0].mxu0 %v544
        %v694 = vpop.f32.mrb[0].mxu0
        %v695 = vadd.f32 0.0, %v694
        %v696 = vpop.f32.mrb[0].mxu0
        %697 = vmatprep.mubr.f32.mxu0 0.0
        %698 = vmatmul.mubr.f32.gmra.mrb[0].mxu0 %v545
        %v699 = vpop.f32.mrb[0].mxu0
        %v700 = vadd.f32 0.0, %v699
        %v701 = vpop.f32.mrb[0].mxu0
        %702 = vmatprep.mubr.f32.mxu0 0.0
        %703 = vmatmul.mubr.f32.gmra.mrb[0].mxu0 %v546
        %v704 = vpop.f32.mrb[0].mxu0
        %v705 = vadd.f32 0.0, %v704
        %v706 = vpop.f32.mrb[0].mxu0
        %707 = vmatprep.mubr.f32.mxu0 0.0
        %708 = vmatmul.mubr.f32.gmra.mrb[0].mxu0 %v547
        %v709 = vpop.f32.mrb[0].mxu0
        %v710 = vadd.f32 0.0, %v709
        %v711 = vpop.f32.mrb[0].mxu0
        %712 = vmatprep.mubr.f32.mxu0 0.0
        %713 = vmatmul.mubr.f32.gmra.mrb[0].mxu0 %v548
        %v714 = vpop.f32.mrb[0].mxu0
        %v715 = vadd.f32 0.0, %v714
        %v716 = vpop.f32.mrb[0].mxu0
        %717 = vmatprep.mubr.f32.mxu0 0.0
        %718 = vmatmul.mubr.f32.gmra.mrb[0].mxu0 %v549
        %v719 = vpop.f32.mrb[0].mxu0
        %v720 = vadd.f32 0.0, %v719
        %v721 = vpop.f32.mrb[0].mxu0
        %722 = vmatprep.mubr.f32.mxu0 0.0
        %723 = vmatmul.mubr.f32.gmra.mrb[0].mxu0 %v550
        %v724 = vpop.f32.mrb[0].mxu0
        %v725 = vadd.f32 0.0, %v724
        %v726 = vpop.f32.mrb[0].mxu0
        %727 = vmatprep.mubr.f32.mxu0 0.0
        %728 = vmatmul.mubr.f32.gmra.mrb[0].mxu0 %v551
        %v729 = vpop.f32.mrb[0].mxu0
        %v730 = vadd.f32 0.0, %v729
        %v731 = vpop.f32.mrb[0].mxu0
        %732 = vmatprep.mubr.f32.mxu0 0.0
        %733 = vmatmul.mubr.f32.gmra.mrb[0].mxu0 %v552
        %v734 = vpop.f32.mrb[0].mxu0
        %v735 = vadd.f32 0.0, %v734
        %v736 = vpop.f32.mrb[0].mxu0
        %737 = vmatprep.mubr.f32.mxu0 0.0
        %738 = vmatmul.mubr.f32.gmra.mrb[0].mxu0 %v553
        %v739 = vpop.f32.mrb[0].mxu0
        %v740 = vadd.f32 0.0, %v739
        %v741 = vpop.f32.mrb[0].mxu0
        %742 = vmatprep.mubr.f32.mxu0 0.0
        %743 = vmatmul.mubr.f32.gmra.mrb[0].mxu0 %v554
        %v744 = vpop.f32.mrb[0].mxu0
        %v745 = vadd.f32 0.0, %v744
        %v746 = vpop.f32.mrb[0].mxu0
        %747 = vmatprep.mubr.f32.mxu0 0.0
        %748 = vmatmul.mubr.f32.gmra.mrb[0].mxu0 %v555
        %v749 = vpop.f32.mrb[0].mxu0
        %v750 = vadd.f32 0.0, %v749
        %v751 = vpop.f32.mrb[0].mxu0
        %752 = vmatprep.mubr.f32.mxu0 0.0
        %753 = vmatmul.mubr.f32.gmra.mrb[0].mxu0 %v556
        %v754 = vpop.f32.mrb[0].mxu0
        %v755 = vadd.f32 0.0, %v754
        %v756 = vpop.f32.mrb[0].mxu0
        %757 = vmatprep.mubr.f32.mxu0 0.0
        %758 = vmatmul.mubr.f32.gmra.mrb[0].mxu0 %v557
        %v759 = vpop.f32.mrb[0].mxu0
        %v760 = vadd.f32 0.0, %v759
        %v761 = vpop.f32.mrb[0].mxu0
        %762 = vmatprep.mubr.f32.mxu0 0.0
        %763 = vmatmul.mubr.f32.gmra.mrb[0].mxu0 %v558
        %v764 = vpop.f32.mrb[0].mxu0
        %v765 = vadd.f32 0.0, %v764
        %v766 = vpop.f32.mrb[0].mxu0
        %767 = vmatprep.mubr.f32.mxu0 0.0
        %768 = vmatmul.mubr.f32.gmra.mrb[0].mxu0 %v559
        %v769 = vpop.f32.mrb[0].mxu0
        %v770 = vadd.f32 0.0, %v769
        %v771 = vpop.f32.mrb[0].mxu0
        %772 = vmatprep.mubr.f32.mxu0 0.0
        %773 = vmatmul.mubr.f32.gmra.mrb[0].mxu0 %v560
        %v774 = vpop.f32.mrb[0].mxu0
        %v775 = vadd.f32 0.0, %v774
        %v776 = vpop.f32.mrb[0].mxu0
        %777 = vmatprep.mubr.f32.mxu0 0.0
        %778 = vmatmul.mubr.f32.gmra.mrb[0].mxu0 %v561
        %v779 = vpop.f32.mrb[0].mxu0
        %v780 = vadd.f32 0.0, %v779
        %v781 = vpop.f32.mrb[0].mxu0
        %782 = vmatprep.mubr.f32.mxu0 0.0
        %783 = vmatmul.mubr.f32.gmra.mrb[0].mxu0 %v562
        %v784 = vpop.f32.mrb[0].mxu0
        %v785 = vadd.f32 0.0, %v784
        %v786 = vpop.f32.mrb[0].mxu0
        %787 = vmatprep.mubr.f32.mxu0 0.0
        %788 = vmatmul.mubr.f32.gmra.mrb[0].mxu0 %v563
        %v789 = vpop.f32.mrb[0].mxu0
        %v790 = vadd.f32 0.0, %v789
        %v791 = vpop.f32.mrb[0].mxu0
        %792 = vmatprep.mubr.f32.mxu0 0.0
        %793 = vmatmul.mubr.f32.gmra.mrb[0].mxu0 %v564
        %v794 = vpop.f32.mrb[0].mxu0
        %v795 = vadd.f32 0.0, %v794
        %v796 = vpop.f32.mrb[0].mxu0
        %797 = vmatprep.mubr.f32.mxu0 0.0
        %798 = vmatmul.mubr.f32.gmra.mrb[0].mxu0 %v565
        %v799 = vpop.f32.mrb[0].mxu0
        %v800 = vadd.f32 0.0, %v799
        %v801 = vpop.f32.mrb[0].mxu0
        %802 = vmatprep.mubr.f32.mxu0 0.0
        %803 = vmatmul.mubr.f32.gmra.mrb[0].mxu0 %v566
        %v804 = vpop.f32.mrb[0].mxu0
        %v805 = vadd.f32 0.0, %v804
        %v806 = vpop.f32.mrb[0].mxu0
        %807 = vdwg.mxu0
        %v808 = vmax.f32 %v650, 0.0
        %v809 = vmax.f32 %v655, 0.0
        %v810 = vmax.f32 %v660, 0.0
        %v811 = vmax.f32 %v665, 0.0
        %v812 = vmax.f32 %v670, 0.0
        %v813 = vmax.f32 %v675, 0.0
        %v814 = vmax.f32 %v680, 0.0
        %v815 = vmax.f32 %v685, 0.0
        %v816 = vmax.f32 %v690, 0.0
        %v817 = vmax.f32 %v695, 0.0
        %v818 = vmax.f32 %v700, 0.0
        %v819 = vmax.f32 %v705, 0.0
        %v820 = vmax.f32 %v710, 0.0
        %v821 = vmax.f32 %v715, 0.0
        %v822 = vmax.f32 %v720, 0.0
        %v823 = vmax.f32 %v725, 0.0
        %v824 = vmax.f32 %v730, 0.0
        %v825 = vmax.f32 %v735, 0.0
        %v826 = vmax.f32 %v740, 0.0
        %v827 = vmax.f32 %v745, 0.0
        %v828 = vmax.f32 %v750, 0.0
        %v829 = vmax.f32 %v755, 0.0
        %v830 = vmax.f32 %v760, 0.0
        %v831 = vmax.f32 %v765, 0.0
        %v832 = vmax.f32 %v770, 0.0
        %v833 = vmax.f32 %v775, 0.0
        %v834 = vmax.f32 %v780, 0.0
        %v835 = vmax.f32 %v785, 0.0
        %v836 = vmax.f32 %v790, 0.0
        %v837 = vmax.f32 %v795, 0.0
        %v838 = vmax.f32 %v800, 0.0
        %v839 = vmax.f32 %v805, 0.0
        %v840 = vld [vmem:[#allocation8] sm:$0xff]
        %v841 = vld [vmem:[#allocation8 + $0x8] sm:$0xff]
        %v842 = vld [vmem:[#allocation8 + $0x10] sm:$0xff]
        %v843 = vld [vmem:[#allocation8 + $0x18] sm:$0xff]
        %v844 = vld [vmem:[#allocation8 + $0x20] sm:$0xff]
        %v845 = vld [vmem:[#allocation8 + $0x28] sm:$0xff]
        %v846 = vld [vmem:[#allocation8 + $0x30] sm:$0xff]
        %v847 = vld [vmem:[#allocation8 + $0x38] sm:$0xff]
        %v848 = vld [vmem:[#allocation8 + $0x40] sm:$0xff]
        %v849 = vld [vmem:[#allocation8 + $0x48] sm:$0xff]
        %v850 = vld [vmem:[#allocation8 + $0x50] sm:$0xff]
        %v851 = vld [vmem:[#allocation8 + $0x58] sm:$0xff]
        %v852 = vld [vmem:[#allocation8 + $0x60] sm:$0xff]
        %v853 = vld [vmem:[#allocation8 + $0x68] sm:$0xff]
        %v854 = vld [vmem:[#allocation8 + $0x70] sm:$0xff]
        %v855 = vld [vmem:[#allocation8 + $0x78] sm:$0xff]
        %856 = vmatprep.subr.mxu0 0.0
        %857 = vmatpush1.msra.mxu0 %v840
        %858 = vmatprep.subr.mxu0 0.0
        %859 = vmatpush1.msra.mxu0 %v841
        %860 = vmatprep.subr.mxu0 0.0
        %861 = vmatpush1.msra.mxu0 %v842
        %862 = vmatprep.subr.mxu0 0.0
        %863 = vmatpush1.msra.mxu0 %v843
        %864 = vmatprep.subr.mxu0 0.0
        %865 = vmatpush1.msra.mxu0 %v844
        %866 = vmatprep.subr.mxu0 0.0
        %867 = vmatpush1.msra.mxu0 %v845
        %868 = vmatprep.subr.mxu0 0.0
        %869 = vmatpush1.msra.mxu0 %v846
        %870 = vmatprep.subr.mxu0 0.0
        %871 = vmatpush1.msra.mxu0 %v847
        %872 = vmatprep.subr.mxu0 0.0
        %873 = vmatpush1.msra.mxu0 %v848
        %874 = vmatprep.subr.mxu0 0.0
        %875 = vmatpush1.msra.mxu0 %v849
        %876 = vmatprep.subr.mxu0 0.0
        %877 = vmatpush1.msra.mxu0 %v850
        %878 = vmatprep.subr.mxu0 0.0
        %879 = vmatpush1.msra.mxu0 %v851
        %880 = vmatprep.subr.mxu0 0.0
        %881 = vmatpush1.msra.mxu0 %v852
        %882 = vmatprep.subr.mxu0 0.0
        %883 = vmatpush1.msra.mxu0 %v853
        %884 = vmatprep.subr.mxu0 0.0
        %885 = vmatpush1.msra.mxu0 %v854
        %886 = vmatprep.subr.mxu0 0.0
        %887 = vmatpush1.msra.mxu0 %v855
        %888 = vmatprep.subr.mxu0 0.0
        %889 = vmatpush1.msra.mxu0 0.0
        %890 = vmatprep.subr.mxu0 0.0
        %891 = vmatpush1.msra.mxu0 0.0
        %892 = vmatprep.subr.mxu0 0.0
        %893 = vmatpush1.msra.mxu0 0.0
        %894 = vmatprep.subr.mxu0 0.0
        %895 = vmatpush1.msra.mxu0 0.0
        %896 = vmatprep.subr.mxu0 0.0
        %897 = vmatpush1.msra.mxu0 0.0
        %898 = vmatprep.subr.mxu0 0.0
        %899 = vmatpush1.msra.mxu0 0.0
        %900 = vmatprep.subr.mxu0 0.0
        %901 = vmatpush1.msra.mxu0 0.0
        %902 = vmatprep.subr.mxu0 0.0
        %903 = vmatpush1.msra.mxu0 0.0
        %904 = vmatprep.subr.mxu0 0.0
        %905 = vmatpush1.msra.mxu0 0.0
        %906 = vmatprep.subr.mxu0 0.0
        %907 = vmatpush1.msra.mxu0 0.0
        %908 = vmatprep.subr.mxu0 0.0
        %909 = vmatpush1.msra.mxu0 0.0
        %910 = vmatprep.subr.mxu0 0.0
        %911 = vmatpush1.msra.mxu0 0.0
        %912 = vmatprep.subr.mxu0 0.0
        %913 = vmatpush1.msra.mxu0 0.0
        %914 = vmatprep.subr.mxu0 0.0
        %915 = vmatpush1.msra.mxu0 0.0
        %916 = vmatprep.subr.mxu0 0.0
        %917 = vmatpush1.msra.mxu0 0.0
        %918 = vmatprep.subr.mxu0 0.0
        %919 = vmatpush1.msra.mxu0 0.0
        %920 = vmatprep.mubr.f32.mxu0 0.0
        %921 = vmatmul.mubr.f32.gmra.mrb[0].mxu0 %v808
        %v922 = vpop.f32.mrb[0].mxu0
        %v923 = vadd.f32 0.0, %v922
        %v924 = vpop.f32.mrb[0].mxu0
        %925 = vmatprep.mubr.f32.mxu0 0.0
        %926 = vmatmul.mubr.f32.gmra.mrb[0].mxu0 %v809
        %v927 = vpop.f32.mrb[0].mxu0
        %v928 = vadd.f32 0.0, %v927
        %v929 = vpop.f32.mrb[0].mxu0
        %930 = vmatprep.mubr.f32.mxu0 0.0
        %931 = vmatmul.mubr.f32.gmra.mrb[0].mxu0 %v810
        %v932 = vpop.f32.mrb[0].mxu0
        %v933 = vadd.f32 0.0, %v932
        %v934 = vpop.f32.mrb[0].mxu0
        %935 = vmatprep.mubr.f32.mxu0 0.0
        %936 = vmatmul.mubr.f32.gmra.mrb[0].mxu0 %v811
        %v937 = vpop.f32.mrb[0].mxu0
        %v938 = vadd.f32 0.0, %v937
        %v939 = vpop.f32.mrb[0].mxu0
        %940 = vmatprep.mubr.f32.mxu0 0.0
        %941 = vmatmul.mubr.f32.gmra.mrb[0].mxu0 %v812
        %v942 = vpop.f32.mrb[0].mxu0
        %v943 = vadd.f32 0.0, %v942
        %v944 = vpop.f32.mrb[0].mxu0
        %945 = vmatprep.mubr.f32.mxu0 0.0
        %946 = vmatmul.mubr.f32.gmra.mrb[0].mxu0 %v813
        %v947 = vpop.f32.mrb[0].mxu0
        %v948 = vadd.f32 0.0, %v947
        %v949 = vpop.f32.mrb[0].mxu0
        %950 = vmatprep.mubr.f32.mxu0 0.0
        %951 = vmatmul.mubr.f32.gmra.mrb[0].mxu0 %v814
        %v952 = vpop.f32.mrb[0].mxu0
        %v953 = vadd.f32 0.0, %v952
        %v954 = vpop.f32.mrb[0].mxu0
        %955 = vmatprep.mubr.f32.mxu0 0.0
        %956 = vmatmul.mubr.f32.gmra.mrb[0].mxu0 %v815
        %v957 = vpop.f32.mrb[0].mxu0
        %v958 = vadd.f32 0.0, %v957
        %v959 = vpop.f32.mrb[0].mxu0
        %960 = vmatprep.mubr.f32.mxu0 0.0
        %961 = vmatmul.mubr.f32.gmra.mrb[0].mxu0 %v816
        %v962 = vpop.f32.mrb[0].mxu0
        %v963 = vadd.f32 0.0, %v962
        %v964 = vpop.f32.mrb[0].mxu0
        %965 = vmatprep.mubr.f32.mxu0 0.0
        %966 = vmatmul.mubr.f32.gmra.mrb[0].mxu0 %v817
        %v967 = vpop.f32.mrb[0].mxu0
        %v968 = vadd.f32 0.0, %v967
        %v969 = vpop.f32.mrb[0].mxu0
        %970 = vmatprep.mubr.f32.mxu0 0.0
        %971 = vmatmul.mubr.f32.gmra.mrb[0].mxu0 %v818
        %v972 = vpop.f32.mrb[0].mxu0
        %v973 = vadd.f32 0.0, %v972
        %v974 = vpop.f32.mrb[0].mxu0
        %975 = vmatprep.mubr.f32.mxu0 0.0
        %976 = vmatmul.mubr.f32.gmra.mrb[0].mxu0 %v819
        %v977 = vpop.f32.mrb[0].mxu0
        %v978 = vadd.f32 0.0, %v977
        %v979 = vpop.f32.mrb[0].mxu0
        %980 = vmatprep.mubr.f32.mxu0 0.0
        %981 = vmatmul.mubr.f32.gmra.mrb[0].mxu0 %v820
        %v982 = vpop.f32.mrb[0].mxu0
        %v983 = vadd.f32 0.0, %v982
        %v984 = vpop.f32.mrb[0].mxu0
        %985 = vmatprep.mubr.f32.mxu0 0.0
        %986 = vmatmul.mubr.f32.gmra.mrb[0].mxu0 %v821
        %v987 = vpop.f32.mrb[0].mxu0
        %v988 = vadd.f32 0.0, %v987
        %v989 = vpop.f32.mrb[0].mxu0
        %990 = vmatprep.mubr.f32.mxu0 0.0
        %991 = vmatmul.mubr.f32.gmra.mrb[0].mxu0 %v822
        %v992 = vpop.f32.mrb[0].mxu0
        %v993 = vadd.f32 0.0, %v992
        %v994 = vpop.f32.mrb[0].mxu0
        %995 = vmatprep.mubr.f32.mxu0 0.0
        %996 = vmatmul.mubr.f32.gmra.mrb[0].mxu0 %v823
        %v997 = vpop.f32.mrb[0].mxu0
        %v998 = vadd.f32 0.0, %v997
        %v999 = vpop.f32.mrb[0].mxu0
        %1000 = vmatprep.mubr.f32.mxu0 0.0
        %1001 = vmatmul.mubr.f32.gmra.mrb[0].mxu0 %v824
        %v1002 = vpop.f32.mrb[0].mxu0
        %v1003 = vadd.f32 0.0, %v1002
        %v1004 = vpop.f32.mrb[0].mxu0
        %1005 = vmatprep.mubr.f32.mxu0 0.0
        %1006 = vmatmul.mubr.f32.gmra.mrb[0].mxu0 %v825
        %v1007 = vpop.f32.mrb[0].mxu0
        %v1008 = vadd.f32 0.0, %v1007
        %v1009 = vpop.f32.mrb[0].mxu0
        %1010 = vmatprep.mubr.f32.mxu0 0.0
        %1011 = vmatmul.mubr.f32.gmra.mrb[0].mxu0 %v826
        %v1012 = vpop.f32.mrb[0].mxu0
        %v1013 = vadd.f32 0.0, %v1012
        %v1014 = vpop.f32.mrb[0].mxu0
        %1015 = vmatprep.mubr.f32.mxu0 0.0
        %1016 = vmatmul.mubr.f32.gmra.mrb[0].mxu0 %v827
        %v1017 = vpop.f32.mrb[0].mxu0
        %v1018 = vadd.f32 0.0, %v1017
        %v1019 = vpop.f32.mrb[0].mxu0
        %1020 = vmatprep.mubr.f32.mxu0 0.0
        %1021 = vmatmul.mubr.f32.gmra.mrb[0].mxu0 %v828
        %v1022 = vpop.f32.mrb[0].mxu0
        %v1023 = vadd.f32 0.0, %v1022
        %v1024 = vpop.f32.mrb[0].mxu0
        %1025 = vmatprep.mubr.f32.mxu0 0.0
        %1026 = vmatmul.mubr.f32.gmra.mrb[0].mxu0 %v829
        %v1027 = vpop.f32.mrb[0].mxu0
        %v1028 = vadd.f32 0.0, %v1027
        %v1029 = vpop.f32.mrb[0].mxu0
        %1030 = vmatprep.mubr.f32.mxu0 0.0
        %1031 = vmatmul.mubr.f32.gmra.mrb[0].mxu0 %v830
        %v1032 = vpop.f32.mrb[0].mxu0
        %v1033 = vadd.f32 0.0, %v1032
        %v1034 = vpop.f32.mrb[0].mxu0
        %1035 = vmatprep.mubr.f32.mxu0 0.0
        %1036 = vmatmul.mubr.f32.gmra.mrb[0].mxu0 %v831
        %v1037 = vpop.f32.mrb[0].mxu0
        %v1038 = vadd.f32 0.0, %v1037
        %v1039 = vpop.f32.mrb[0].mxu0
        %1040 = vmatprep.mubr.f32.mxu0 0.0
        %1041 = vmatmul.mubr.f32.gmra.mrb[0].mxu0 %v832
        %v1042 = vpop.f32.mrb[0].mxu0
        %v1043 = vadd.f32 0.0, %v1042
        %v1044 = vpop.f32.mrb[0].mxu0
        %1045 = vmatprep.mubr.f32.mxu0 0.0
        %1046 = vmatmul.mubr.f32.gmra.mrb[0].mxu0 %v833
        %v1047 = vpop.f32.mrb[0].mxu0
        %v1048 = vadd.f32 0.0, %v1047
        %v1049 = vpop.f32.mrb[0].mxu0
        %1050 = vmatprep.mubr.f32.mxu0 0.0
        %1051 = vmatmul.mubr.f32.gmra.mrb[0].mxu0 %v834
        %v1052 = vpop.f32.mrb[0].mxu0
        %v1053 = vadd.f32 0.0, %v1052
        %v1054 = vpop.f32.mrb[0].mxu0
        %1055 = vmatprep.mubr.f32.mxu0 0.0
        %1056 = vmatmul.mubr.f32.gmra.mrb[0].mxu0 %v835
        %v1057 = vpop.f32.mrb[0].mxu0
        %v1058 = vadd.f32 0.0, %v1057
        %v1059 = vpop.f32.mrb[0].mxu0
        %1060 = vmatprep.mubr.f32.mxu0 0.0
        %1061 = vmatmul.mubr.f32.gmra.mrb[0].mxu0 %v836
        %v1062 = vpop.f32.mrb[0].mxu0
        %v1063 = vadd.f32 0.0, %v1062
        %v1064 = vpop.f32.mrb[0].mxu0
        %1065 = vmatprep.mubr.f32.mxu0 0.0
        %1066 = vmatmul.mubr.f32.gmra.mrb[0].mxu0 %v837
        %v1067 = vpop.f32.mrb[0].mxu0
        %v1068 = vadd.f32 0.0, %v1067
        %v1069 = vpop.f32.mrb[0].mxu0
        %1070 = vmatprep.mubr.f32.mxu0 0.0
        %1071 = vmatmul.mubr.f32.gmra.mrb[0].mxu0 %v838
        %v1072 = vpop.f32.mrb[0].mxu0
        %v1073 = vadd.f32 0.0, %v1072
        %v1074 = vpop.f32.mrb[0].mxu0
        %1075 = vmatprep.mubr.f32.mxu0 0.0
        %1076 = vmatmul.mubr.f32.gmra.mrb[0].mxu0 %v839
        %v1077 = vpop.f32.mrb[0].mxu0
        %v1078 = vadd.f32 0.0, %v1077
        %v1079 = vpop.f32.mrb[0].mxu0
        %1080 = vdwg.mxu0
        %1081 = vst [vmem:[%s259] sm:$0xff] %v923
        %1082 = vst [vmem:[%s259 + $0x8] sm:$0xff] %v928
        %1083 = vst [vmem:[%s259 + $0x10] sm:$0xff] %v933
        %1084 = vst [vmem:[%s259 + $0x18] sm:$0xff] %v938
        %1085 = vst [vmem:[%s259 + $0x20] sm:$0xff] %v943
        %1086 = vst [vmem:[%s259 + $0x28] sm:$0xff] %v948
        %1087 = vst [vmem:[%s259 + $0x30] sm:$0xff] %v953
        %1088 = vst [vmem:[%s259 + $0x38] sm:$0xff] %v958
        %1089 = vst [vmem:[%s259 + $0x40] sm:$0xff] %v963
        %1090 = vst [vmem:[%s259 + $0x48] sm:$0xff] %v968
        %1091 = vst [vmem:[%s259 + $0x50] sm:$0xff] %v973
        %1092 = vst [vmem:[%s259 + $0x58] sm:$0xff] %v978
        %1093 = vst [vmem:[%s259 + $0x60] sm:$0xff] %v983
        %1094 = vst [vmem:[%s259 + $0x68] sm:$0xff] %v988
        %1095 = vst [vmem:[%s259 + $0x70] sm:$0xff] %v993
        %1096 = vst [vmem:[%s259 + $0x78] sm:$0xff] %v998
        %1097 = vst [vmem:[%s259 + $0x80] sm:$0xff] %v1003
        %1098 = vst [vmem:[%s259 + $0x88] sm:$0xff] %v1008
        %1099 = vst [vmem:[%s259 + $0x90] sm:$0xff] %v1013
        %1100 = vst [vmem:[%s259 + $0x98] sm:$0xff] %v1018
        %1101 = vst [vmem:[%s259 + $0xa0] sm:$0xff] %v1023
        %1102 = vst [vmem:[%s259 + $0xa8] sm:$0xff] %v1028
        %1103 = vst [vmem:[%s259 + $0xb0] sm:$0xff] %v1033
        %1104 = vst [vmem:[%s259 + $0xb8] sm:$0xff] %v1038
        %1105 = vst [vmem:[%s259 + $0xc0] sm:$0xff] %v1043
        %1106 = vst [vmem:[%s259 + $0xc8] sm:$0xff] %v1048
        %1107 = vst [vmem:[%s259 + $0xd0] sm:$0xff] %v1053
        %1108 = vst [vmem:[%s259 + $0xd8] sm:$0xff] %v1058
        %1109 = vst [vmem:[%s259 + $0xe0] sm:$0xff] %v1063
        %1110 = vst [vmem:[%s259 + $0xe8] sm:$0xff] %v1068
        %1111 = vst [vmem:[%s259 + $0xf0] sm:$0xff] %v1073
        %1112 = vst [vmem:[%s259 + $0xf8] sm:$0xff] %v1078
        %s1113 = sand.u32 %s120, 1
        %s1114 = scalar_lea.sflag [#allocation4], %s1113
        %s1115 = sand.u32 %s120, 1
        %s1116 = smul.addr %s1115, 256
        %s1117 = scalar_lea.vmem [#allocation10], %s1116
        // Predicated region
        $region53: #{tpu_custom_call.1} parent=35 // pred_check
          %p1118 = pneg %p130
        $region54: #{tpu_custom_call.1} parent=35 // pred_check_branch
          %1120 = sbr.rel (%p1118) target = $region56
        $region55: #{tpu_custom_call.1} parent=35 // pred_region
          %s1121 = smul.u32 32, %s23
          %s1123 = ssub.s32 4096, 4096
          %1124 = vsyncadd %s1114, %s1123
          %s1125 = smul.addr %s1121, 128
          %s1126 = scalar_lea.hbm %s4, %s1125
          %s1127 = sshll.u32 %s1117, 4
          %s1128 = int_to_ptr.vmem [resolvable:$true] %s1127
          %1133 = dma.vmem_to_hbm [thread:$0]  %s1128, 4096, %s1126, %s1114, 128, 128, 8
        $region56: #{tpu_custom_call.1} parent=35 // pred_fallthru
          _
      $region36: #{tpu_custom_call.1} parent=5 // pred_fallthru
        _
      %p1134 = scmp.le.s32.totalorder 2, %s18
      // Predicated region
      $region57: #{tpu_custom_call.1} parent=5 // pred_check
        %p1135 = pneg %p1134
      $region58: #{tpu_custom_call.1} parent=5 // pred_check_branch
        %1137 = sbr.rel (%p1135) target = $region60
      $region59: #{tpu_custom_call.1} parent=5 // pred_region
        %s1138 = ssub.s32 %s18, 2
        // Predicated region
        $region61: #{tpu_custom_call.1} parent=59 // pred_check
          %p1139 = pneg %p136
        $region62: #{tpu_custom_call.1} parent=59 // pred_check_branch
          %1141 = sbr.rel (%p1139) target = $region64
        $region63: #{tpu_custom_call.1} parent=59 // pred_region
          %s1142 = sand.u32 %s121, 1
          %s1143 = scalar_lea.sflag [#allocation4], %s1142
          %s1144 = sand.u32 %s121, 1
          %s1145 = smul.addr %s1144, 256
          %s1146 = scalar_lea.vmem [#allocation10], %s1145
          %1147 = dma.done %s1143, 4096
        $region64: #{tpu_custom_call.1} parent=59 // pred_fallthru
          _
      $region60: #{tpu_custom_call.1} parent=5 // pred_fallthru
        _
    $region6: #{tpu_custom_call.1} parent=1 // loop_footer
      %s22 = sadd.s32 1, %s18
    $region7: #{tpu_custom_call.1} parent=1 // loop_footer_branch
      %17 = sbr.rel target = $region3
    $region8: #{tpu_custom_call.1} parent=1 // loop_exit
      _
    %1148 = vsyncpa [#allocation3], 1
    %s1149 = scalar_lea.sflag [#allocation3], 1
    %1150 = vsyncpa %s1149, 1
    %1151 = vsyncpa [#allocation6], 1
    %1152 = vsyncpa [#allocation9], 1
    %1153 = vsyncpa [#allocation4], 1
    %s1154 = scalar_lea.sflag [#allocation4], 1
    %1155 = vsyncpa %s1154, 1

</llo_original>
